<compile_context>
chip_gen: v7x
topology: tpu7x:2x2x1
jax: 0.10.0
libtpu: 0.0.40
codegen_flags: <defaults>
</compile_context>

<pallas_src>
import functools
import math

import numpy as np

import jax
import jax.numpy as jnp
from jax.experimental import pallas as pl
from jax.experimental.pallas import tpu as pltpu

D_MODEL = 64
MAX_LEN = 5000
DROPOUT_P = 0.1


def make_positional_encoding(max_len: int = MAX_LEN, d_model: int = D_MODEL) -> jnp.ndarray:
    """Reproduces the buffer built in PositionalEncoding.__init__ (squeezed to [max_len, d_model])."""
    position = np.arange(0, max_len, dtype=np.float32)[:, None]            # [max_len, 1]
    div_term = np.exp(np.arange(0, d_model, 2, dtype=np.float32)
                      * (-math.log(10000.0) / d_model))                    # [d_model/2]
    pe = np.zeros((max_len, d_model), dtype=np.float32)
    pe[:, 0::2] = np.sin(position * div_term)
    pe[:, 1::2] = np.cos(position * div_term)
    return jnp.asarray(pe)                                                 # [max_len, d_model]


def _pe_eval_kernel(x_ref, pe_ref, o_ref, *, batch: int):
    # x_ref: [tile_s, B*D]   pe_ref: [tile_s, D]   o_ref: [tile_s, B*D]
    pe = jnp.tile(pe_ref[...], (1, batch))          # replicate across batch (lane copy)
    o_ref[...] = (x_ref[...] + pe).astype(o_ref.dtype)


def _pe_train_kernel(x_ref, pe_ref, bits_ref, o_ref, *, batch: int,
                     threshold: int, scale: float):
    # Inverted dropout: drop element iff bits < round(p * 2^32); keep => * 1/(1-p).
    pe = jnp.tile(pe_ref[...], (1, batch))
    y = x_ref[...] + pe
    keep = bits_ref[...] >= jnp.uint32(threshold)   # unsigned integer-domain compare
    o_ref[...] = jnp.where(keep, y * scale, 0.0).astype(o_ref.dtype)


def _choose_seq_tile(seq_len: int, row_bytes: int, target_bytes: int = 1 << 20) -> int:
    """Largest seq tile (multiple of 8, <=2048 rows) giving ~1 MiB x-blocks."""
    rows = max(8, target_bytes // max(row_bytes, 1))
    rows = min(int(rows), 2048)
    rows -= rows % 8
    rows = max(rows, 8)
    return seq_len if rows >= seq_len else rows


def positional_encoding_forward(x: jnp.ndarray,
                                pe_table: jnp.ndarray,
                                *,
                                p: float = DROPOUT_P,
                                training: bool = False,
                                rng_key=None) -> jnp.ndarray:
    """x: [seq_len, batch, d_model] -> [seq_len, batch, d_model]."""
    S, B, D = x.shape
    BD = B * D
    pe_slice = pe_table[:S, :]                      # [S, D]  (== self.pe[:x.size(0), :])
    x2 = x.reshape(S, BD)                           # lane-dense layout (cheap reshape)

    tile_s = _choose_seq_tile(S, BD * x.dtype.itemsize)
    grid = (pl.cdiv(S, tile_s),)                    # ragged last tile handled by Pallas

    x_spec = pl.BlockSpec((tile_s, BD), lambda i: (i, 0))
    pe_spec = pl.BlockSpec((tile_s, D), lambda i: (i, 0))
    out_spec = pl.BlockSpec((tile_s, BD), lambda i: (i, 0))
    cparams = pltpu.CompilerParams(
        dimension_semantics=("parallel",),          # lets v7x shard steps across 2 TCs
        vmem_limit_bytes=32 << 20,
    )

    use_dropout = training and p > 0.0
    if not use_dropout:
        # Eval hot path: no seed / bits plumbing at all.
        kernel = functools.partial(_pe_eval_kernel, batch=B)
        out2 = pl.pallas_call(
            kernel,
            out_shape=jax.ShapeDtypeStruct((S, BD), x.dtype),
            grid_spec=pl.GridSpec(grid=grid, in_specs=[x_spec, pe_spec],
                                  out_specs=out_spec),
            compiler_params=cparams,
        )(x2, pe_slice)
    else:
        if rng_key is None:
            rng_key = jax.random.PRNGKey(0)
        # TODO(synk): torch's dropout RNG stream cannot be reproduced bit-exactly;
        # semantics (keep-prob 1-p, 1/(1-p) scaling) are preserved. Bits are drawn
        # with jax.random outside the kernel for portability (interpret + TPU).
        bits = jax.random.bits(rng_key, (S, BD), dtype=jnp.uint32)
        threshold = min(int(round(p * (1 << 32))), (1 << 32) - 1)
        kernel = functools.partial(_pe_train_kernel, batch=B,
                                   threshold=threshold, scale=1.0 / (1.0 - p))
        out2 = pl.pallas_call(
            kernel,
            out_shape=jax.ShapeDtypeStruct((S, BD), x.dtype),
            grid_spec=pl.GridSpec(grid=grid, in_specs=[x_spec, pe_spec, x_spec],
                                  out_specs=out_spec),
            compiler_params=cparams,
        )(x2, pe_slice, bits)

    return out2.reshape(S, B, D)


if __name__ == "__main__":
    key = jax.random.PRNGKey(0)
    seq_len, batch = 8, 2
    x = jax.random.normal(key, (seq_len, batch, D_MODEL), dtype=jnp.float32)

    pe_table = make_positional_encoding()

    # Eval-mode forward (dropout is identity), matches the PyTorch module in .eval().
    out = positional_encoding_forward(x, pe_table, training=False)
    out = jax.block_until_ready(out)

    ref = np.asarray(x) + np.asarray(pe_table)[:seq_len][:, None, :]
    np.testing.assert_allclose(np.asarray(out), ref, rtol=1e-6, atol=1e-6)

    # Training path (inverted dropout). Invariant: every output element is either
    # exactly 0 (dropped) or the reference scaled by 1/(1-p).
    out_train = positional_encoding_forward(
        x, pe_table, training=True, rng_key=jax.random.PRNGKey(123))
    out_train = np.asarray(jax.block_until_ready(out_train))
    scaled = ref / (1.0 - DROPOUT_P)
    ok = np.logical_or(out_train == 0.0,
                       np.isclose(out_train, scaled, rtol=1e-5, atol=1e-5))
    assert bool(ok.all()), "dropout output violates keep/scale invariant"

    print("KERNEL_OK")
</pallas_src>

<mosaic_0001>
module attributes {stable_mosaic.version = 11 : i64} {
  func.func @_pe_eval_kernel(%arg0: i32, %arg1: memref<8x128xf32, #tpu.memory_space<vmem>>, %arg2: memref<8x64xf32, #tpu.memory_space<vmem>>, %arg3: memref<8x128xf32, #tpu.memory_space<vmem>>) attributes {dimension_semantics = [#tpu.dimension_semantics<parallel>], iteration_bounds = array<i64: 1>, scalar_prefetch = 0 : i64, scratch_operands = 0 : i64, tpu.core_type = #tpu.core_type<tc>, window_params = [{transform_indices = @transform_0, window_bounds = array<i64: 8, 128>}, {transform_indices = @transform_1, window_bounds = array<i64: 8, 64>}, {transform_indices = @transform_2, window_bounds = array<i64: 8, 128>}]} {
    %c0 = arith.constant 0 : index
    %c0_0 = arith.constant 0 : index
    %0 = vector.load %arg2[%c0, %c0_0] : memref<8x64xf32, #tpu.memory_space<vmem>>, vector<8x64xf32>
    %1 = tpu.concatenate %0, %0 in 1 : vector<8x64xf32>, vector<8x64xf32> -> vector<8x128xf32>
    %c0_1 = arith.constant 0 : index
    %c0_2 = arith.constant 0 : index
    %2 = vector.load %arg1[%c0_1, %c0_2] : memref<8x128xf32, #tpu.memory_space<vmem>>, vector<8x128xf32>
    %3 = arith.addf %2, %1 : vector<8x128xf32>
    %c0_3 = arith.constant 0 : index
    %c0_4 = arith.constant 0 : index
    %4 = vector.load %arg3[%c0_3, %c0_4] : memref<8x128xf32, #tpu.memory_space<vmem>>, vector<8x128xf32>
    tpu.vector_store %arg3[%c0_3, %c0_4], %3 {strides = array<i32>} : memref<8x128xf32, #tpu.memory_space<vmem>>, vector<8x128xf32>,
    return
  }
  func.func @transform_0(%arg0: i32) -> (i32, i32) {
    %c0_i32 = arith.constant 0 : i32
    %c0_i32_0 = arith.constant 0 : i32
    return %arg0, %c0_i32 : i32, i32
  }
  func.func @transform_1(%arg0: i32) -> (i32, i32) {
    %c0_i32 = arith.constant 0 : i32
    %c0_i32_0 = arith.constant 0 : i32
    return %arg0, %c0_i32 : i32, i32
  }
  func.func @transform_2(%arg0: i32) -> (i32, i32) {
    %c0_i32 = arith.constant 0 : i32
    %c0_i32_0 = arith.constant 0 : i32
    return %arg0, %c0_i32 : i32, i32
  }
}

</mosaic_0001>

<llo_original>
// kernel: tpu_custom_call.1
$region0: #{tpu_custom_call.1}
  #allocation0 [shape = 'u32[]', space=smem, size = 0x4, offset = 0x4, fixed_abs, tag = 'smem constant byte address 0x4 - core index']
  #allocation1 [shape = 'u32[144,128]{1,0:T(1,128)}', space=vmem, size = 0x12000, scoped, tag = 'internal scratch']
  %s0 = inlined_call_operand.hbm [shape: f32[8,128], index: 0, kind: input, shape index: {}]
  %s1 = inlined_call_operand.hbm [shape: f32[8,64], index: 1, kind: input, shape index: {}]
  %s2 = inlined_call_operand.hbm [shape: f32[8,128], index: 2, kind: output, shape index: {}]
  %s3 = sld [smem:[#allocation0]]
  $region26: #{tpu_custom_call.1} parent=0
    _
  %s5 = ssub.s32 1, %s3
  %s6 = scalar_select 0, %s5, %s3
  $region1: #{tpu_custom_call.1} parent=0
    #allocation2 [shape = 'u8[4096]{0}', space=vmem, size = 0x1000, scoped, tag = 'input window, operand 0, single buffered']
    #allocation3 [shape = 's32[1]{0}', space=sflag, size = 0x4, scoped, tag = 'scoped memory for tpu_custom_call.1']
    #allocation4 [shape = 's32[1]{0}', space=sflag, size = 0x4, scoped, tag = 'scoped memory for tpu_custom_call.1']
    #allocation5 [shape = 'u8[4096]{0}', space=vmem, size = 0x1000, scoped, tag = 'input window, operand 1, single buffered']
    #allocation6 [shape = 's32[1]{0}', space=sflag, size = 0x4, scoped, tag = 'scoped memory for tpu_custom_call.1']
    #allocation7 [shape = 'u8[4096]{0}', space=vmem, size = 0x1000, scoped, tag = 'output window, operand 0, single buffered']
    %7 = vsyncpa [#allocation3], 0
    %8 = vsyncpa [#allocation6], 0
    %9 = vsyncpa [#allocation4], 0
    // Predicated region
    $region2: #{tpu_custom_call.1} parent=1 // pred_check
      _
    $region3: #{tpu_custom_call.1} parent=1 // pred_check_branch
      %11 = sbr.rel (0) target = $region5
    $region4: #{tpu_custom_call.1} parent=1 // pred_region
      %s13 = ssub.s32 128, 128
      %14 = vsyncadd [#allocation3], %s13
      %s16 = sshll.u32 [#allocation2], 4
      %s17 = int_to_ptr.vmem [resolvable:$true] %s16
      %19 = dma.hbm_to_vmem [thread:$0]  %s0, 128, %s17, [#allocation3]
    $region5: #{tpu_custom_call.1} parent=1 // pred_fallthru
      _
    // Predicated region
    $region6: #{tpu_custom_call.1} parent=1 // pred_check
      _
    $region7: #{tpu_custom_call.1} parent=1 // pred_check_branch
      %21 = sbr.rel (0) target = $region9
    $region8: #{tpu_custom_call.1} parent=1 // pred_region
      %s23 = ssub.s32 128, 128
      %24 = vsyncadd [#allocation6], %s23
      %s26 = sshll.u32 [#allocation5], 4
      %s27 = int_to_ptr.vmem [resolvable:$true] %s26
      %29 = dma.hbm_to_vmem [thread:$0]  %s1, 128, %s27, [#allocation6]
    $region9: #{tpu_custom_call.1} parent=1 // pred_fallthru
      _
    // Predicated region
    $region10: #{tpu_custom_call.1} parent=1 // pred_check
      _
    $region11: #{tpu_custom_call.1} parent=1 // pred_check_branch
      %31 = sbr.rel (0) target = $region13
    $region12: #{tpu_custom_call.1} parent=1 // pred_region
      %32 = dma.done [#allocation3], 128
    $region13: #{tpu_custom_call.1} parent=1 // pred_fallthru
      _
    // Predicated region
    $region14: #{tpu_custom_call.1} parent=1 // pred_check
      _
    $region15: #{tpu_custom_call.1} parent=1 // pred_check_branch
      %34 = sbr.rel (0) target = $region17
    $region16: #{tpu_custom_call.1} parent=1 // pred_region
      %35 = dma.done [#allocation6], 128
    $region17: #{tpu_custom_call.1} parent=1 // pred_fallthru
      _
    %v36 = vld [vmem:[#allocation5] sm:$0xff]
    %38 = vrot.lane.b32.xlu0 %v36, 64
    %v39 = vpop.permute.xlu0 %38
    %vm41 = vcmask 523264
    %v42 = vsel %vm41, %v36, %v39
    %v43 = vld [vmem:[#allocation2] sm:$0xff]
    %v44 = vadd.f32 %v43, %v42
    %45 = vst [vmem:[#allocation7] sm:$0xff] %v44
    // Predicated region
    $region18: #{tpu_custom_call.1} parent=1 // pred_check
      _
    $region19: #{tpu_custom_call.1} parent=1 // pred_check_branch
      %47 = sbr.rel (0) target = $region21
    $region20: #{tpu_custom_call.1} parent=1 // pred_region
      %s49 = ssub.s32 128, 128
      %50 = vsyncadd [#allocation4], %s49
      %s52 = sshll.u32 [#allocation7], 4
      %s53 = int_to_ptr.vmem [resolvable:$true] %s52
      %55 = dma.vmem_to_hbm [thread:$0]  %s53, 128, %s2, [#allocation4]
    $region21: #{tpu_custom_call.1} parent=1 // pred_fallthru
      _
    // Predicated region
    $region22: #{tpu_custom_call.1} parent=1 // pred_check
      _
    $region23: #{tpu_custom_call.1} parent=1 // pred_check_branch
      %57 = sbr.rel (0) target = $region25
    $region24: #{tpu_custom_call.1} parent=1 // pred_region
      %58 = dma.done [#allocation4], 128
    $region25: #{tpu_custom_call.1} parent=1 // pred_fallthru
      _
    %59 = vsyncpa [#allocation3], 1
    %60 = vsyncpa [#allocation6], 1
    %61 = vsyncpa [#allocation4], 1

</llo_original>
